<compile_context>
chip_gen: v5e
topology: v5e:2x2
jax: 0.10.0
libtpu: 0.0.40
codegen_flags: <defaults>
</compile_context>

<pallas_src>
import functools

import jax
import jax.numpy as jnp
from jax.experimental import pallas as pl
from jax.experimental.pallas import tpu as pltpu

_LANES = 128                      # TPU lane width (minor dim)
_MAX_TILE_ROWS = 8192             # 8192*128*4B = 4 MiB f32 per input buffer
# TODO(synk): on v7x (3.2 TB/s HBM) tile_rows up to 16384 and
# pipeline_mode=pl.Buffered(3) are worth sweeping; one code path kept here.
_MAX_ACC_ROWS = 64                # 8 vregs of independent partial sums
_MIN_PALLAS_ELEMS = 16384         # below this a fused XLA reduce wins
_MIN_BLOCKS_FOR_SPLIT = 8         # only split across cores if enough work
_VMEM_LIMIT_BYTES = 48 * 1024 * 1024


def _pick_acc_rows(tile_rows: int) -> int:
    """Largest supported accumulator height that divides tile_rows."""
    if tile_rows <= _MAX_ACC_ROWS:
        return tile_rows
    for cand in (64, 32, 16, 8):
        if tile_rows % cand == 0:
            return cand
    return 1


def _gan_loss_sum_kernel(pred_ref, out_ref, acc_ref, *, label, rows_total,
                         tile_rows, acc_rows, blocks_per_part, needs_mask):
    """Accumulates sum((pred - label)^2) over the inner (arbitrary) grid axis.

    Grid = (num_parts, blocks_per_part). Each part writes its own (1, 1, 128)
    per-lane partial-sum block so the leading axis can be sharded across
    TensorCores (v7x) while staying correct on single-core chips.
    """
    c = pl.program_id(0)
    i = pl.program_id(1)

    @pl.when(i == 0)
    def _():
        acc_ref[...] = jnp.zeros_like(acc_ref)

    x = pred_ref[...].astype(jnp.float32)              # (tile_rows, 128)
    d = (x - label) if label != 0.0 else x             # fake label: skip sub
    sq = d * d

    def fold(v):
        # (tile_rows, 128) -> (acc_rows, 128): several independent partial-sum
        # vregs (VPU-only); the cross-lane reduce is deferred to the wrapper.
        if acc_rows == 1:
            return v.sum(axis=0, keepdims=True)
        if tile_rows > acc_rows:
            return v.reshape(tile_rows // acc_rows, acc_rows, _LANES).sum(axis=0)
        return v

    if needs_mask:
        blk = c * blocks_per_part + i                  # global, unclamped
        in_bounds = (blk + 1) * tile_rows <= rows_total

        @pl.when(in_bounds)
        def _():
            acc_ref[...] += fold(sq)

        @pl.when(jnp.logical_not(in_bounds))
        def _():
            # Only the overrunning block(s) pay for iota + compare + select.
            row_ids = blk * tile_rows + jax.lax.broadcasted_iota(
                jnp.int32, sq.shape, 0)
            acc_ref[...] += fold(jnp.where(row_ids < rows_total, sq, 0.0))
    else:
        acc_ref[...] += fold(sq)

    @pl.when(i == pl.num_programs(1) - 1)
    def _():
        # Lane-dense (1,1,128) per-lane partial sums: unmasked full-vreg store.
        out_ref[...] = jnp.expand_dims(
            jnp.sum(acc_ref[...], axis=0, keepdims=True), 0)


def gan_loss(pred, target_is_real: bool, *,
             max_tile_rows: int = _MAX_TILE_ROWS,
             min_pallas_elems: int = _MIN_PALLAS_ELEMS,
             force_pallas: bool = False):
    """LSGAN loss: mean((pred - label)^2), label = 1.0 if real else 0.0."""
    n = int(pred.size)
    label = 1.0 if target_is_real else 0.0
    flat = pred.reshape(-1)

    def _xla_sum_sq(v):
        v = v.astype(jnp.float32)
        dd = (v - label) if label != 0.0 else v
        return jnp.sum(dd * dd)

    # Launch-bound sizes: one fused XLA reduction beats a pallas_call dispatch.
    if n < _LANES or (n < min_pallas_elems and not force_pallas):
        return _xla_sum_sq(flat) * jnp.float32(1.0 / n)

    rows = n // _LANES
    tail = n % _LANES
    if tail:
        # <=127 trailing elements: tiny XLA reduce instead of padding/copying
        # the whole array through HBM.
        tail_sum = _xla_sum_sq(flat[rows * _LANES:])
        main = flat[: rows * _LANES]
        # TODO(synk): the prefix slice above may still materialize a copy in
        # XLA; a fully copy-free ragged path would need 1-D blocks in-kernel.
    else:
        tail_sum = None
        main = flat
    x2d = main.reshape(rows, _LANES)

    tile_rows = min(rows, max_tile_rows)
    num_blocks = pl.cdiv(rows, tile_rows)
    # Two independent halves when there is enough work: on v7x the leading
    # "parallel" axis shards across both TensorCores; on 1-TC chips it is a
    # plain sequential outer loop.
    num_parts = 2 if num_blocks >= _MIN_BLOCKS_FOR_SPLIT else 1
    blocks_per_part = pl.cdiv(num_blocks, num_parts)
    acc_rows = _pick_acc_rows(tile_rows)
    needs_mask = (num_parts * blocks_per_part * tile_rows) != rows

    kernel = functools.partial(
        _gan_loss_sum_kernel,
        label=float(label),
        rows_total=rows,
        tile_rows=tile_rows,
        acc_rows=acc_rows,
        blocks_per_part=blocks_per_part,
        needs_mask=needs_mask,
    )

    def in_index_map(c, i):
        # Clamp so a part's trailing slot never maps fully out of range (the
        # clamped duplicate read is zeroed by the in-kernel row mask).
        return (jnp.minimum(c * blocks_per_part + i, num_blocks - 1), 0)

    itemsize = jnp.dtype(pred.dtype).itemsize
    cost = pl.CostEstimate(flops=3 * n, transcendentals=0,
                           bytes_accessed=n * itemsize + 512 * num_parts)

    partials = pl.pallas_call(
        kernel,
        out_shape=jax.ShapeDtypeStruct((num_parts, 1, _LANES), jnp.float32),
        grid_spec=pltpu.PrefetchScalarGridSpec(
            num_scalar_prefetch=0,
            grid=(num_parts, blocks_per_part),
            in_specs=[pl.BlockSpec((tile_rows, _LANES), in_index_map)],
            out_specs=pl.BlockSpec((1, 1, _LANES), lambda c, i: (c, 0, 0)),
            scratch_shapes=[pltpu.VMEM((acc_rows, _LANES), jnp.float32)],
        ),
        compiler_params=pltpu.CompilerParams(
            dimension_semantics=("parallel", "arbitrary"),
            vmem_limit_bytes=_VMEM_LIMIT_BYTES,
        ),
        cost_estimate=cost,
    )(x2d)

    total = jnp.sum(partials)                       # sum over parts and lanes
    if tail_sum is not None:
        total = total + tail_sum
    return total * jnp.float32(1.0 / n)


if __name__ == "__main__":
    key = jax.random.PRNGKey(0)
    k1, k2, k3, k4 = jax.random.split(key, 4)

    def ref_loss(p, real):
        lbl = 1.0 if real else 0.0
        return jnp.mean((p.astype(jnp.float32) - lbl) ** 2)

    # 1) Discriminator logit map large enough for the Pallas path:
    #    NCHW = [2, 4, 64, 64] -> 32768 elems -> 256 rows, single block.
    pred = jax.random.normal(k1, (2, 4, 64, 64), dtype=jnp.float32)
    for real in (True, False):
        got = gan_loss(pred, real)
        jax.block_until_ready(got)
        assert jnp.allclose(got, ref_loss(pred, real), rtol=1e-4, atol=1e-6)

    # 2) Small map [2, 4, 16, 16]: default fused-XLA fallback AND the forced
    #    Pallas single-block path.
    pred_small = jax.random.normal(k2, (2, 4, 16, 16), dtype=jnp.float32)
    for real in (True, False):
        ref = ref_loss(pred_small, real)
        got_xla = gan_loss(pred_small, real)
        got_pal = gan_loss(pred_small, real, force_pallas=True)
        jax.block_until_ready((got_xla, got_pal))
        assert jnp.allclose(got_xla, ref, rtol=1e-4, atol=1e-6)
        assert jnp.allclose(got_pal, ref, rtol=1e-4, atol=1e-6)

    # 3) Multi-block paths on [4, 8, 64, 72] (147456 elems -> 1152 rows):
    #    default single-block, a ragged last block (runtime-masked), and the
    #    2-way core split (9 blocks, incl. one clamped duplicate slot).
    pred_big = jax.random.normal(k3, (4, 8, 64, 72), dtype=jnp.float32)
    ref_big = ref_loss(pred_big, True)
    got_default = gan_loss(pred_big, True)
    got_ragged = gan_loss(pred_big, True, max_tile_rows=320)
    got_split = gan_loss(pred_big, True, max_tile_rows=128)
    jax.block_until_ready((got_default, got_ragged, got_split))
    assert jnp.allclose(got_default, ref_big, rtol=1e-4, atol=1e-6)
    assert jnp.allclose(got_ragged, ref_big, rtol=1e-4, atol=1e-6)
    assert jnp.allclose(got_split, ref_big, rtol=1e-4, atol=1e-6)

    # 4) Ragged lane count (1155 elems = 9 full rows + 3-elem tail), forced
    #    through the Pallas path to exercise the no-copy tail handling.
    pred_odd = jax.random.normal(k4, (3, 5, 7, 11), dtype=jnp.float32)
    got_odd = gan_loss(pred_odd, False, force_pallas=True)
    jax.block_until_ready(got_odd)
    assert jnp.allclose(got_odd, ref_loss(pred_odd, False), rtol=1e-4, atol=1e-6)

    print("KERNEL_OK")
</pallas_src>

<mosaic_0001>
module attributes {stable_mosaic.version = 11 : i64} {
  func.func @_gan_loss_sum_kernel(%arg0: i32, %arg1: i32, %arg2: memref<256x128xf32, #tpu.memory_space<vmem>>, %arg3: memref<1x1x128xf32, #tpu.memory_space<vmem>>, %arg4: memref<64x128xf32, #tpu.memory_space<vmem>>) attributes {dimension_semantics = [#tpu.dimension_semantics<parallel>, #tpu.dimension_semantics<arbitrary>], iteration_bounds = array<i64: 1, 1>, scalar_prefetch = 0 : i64, scratch_operands = 1 : i64, tpu.core_type = #tpu.core_type<tc>, window_params = [{transform_indices = @transform_0, window_bounds = array<i64: 256, 128>}, {transform_indices = @transform_1, window_bounds = array<i64: 1, 1, 128>}]} {
    %c0_i32 = arith.constant 0 : i32
    %0 = arith.cmpi eq, %arg1, %c0_i32 : i32
    %1 = arith.extui %0 : i1 to i32
    %c0_i32_0 = arith.constant 0 : i32
    %2 = arith.cmpi ne, %1, %c0_i32_0 : i32
    scf.if %2 {
      %cst_9 = arith.constant 0.000000e+00 : f32
      %15 = vector.broadcast %cst_9 : f32 to vector<64x128xf32>
      %c0_10 = arith.constant 0 : index
      %c0_11 = arith.constant 0 : index
      %16 = vector.load %arg4[%c0_10, %c0_11] : memref<64x128xf32, #tpu.memory_space<vmem>>, vector<64x128xf32>
      tpu.vector_store %arg4[%c0_10, %c0_11], %15 {strides = array<i32>} : memref<64x128xf32, #tpu.memory_space<vmem>>, vector<64x128xf32>,
    } else {
    }
    %c0 = arith.constant 0 : index
    %c0_1 = arith.constant 0 : index
    %3 = vector.load %arg2[%c0, %c0_1] : memref<256x128xf32, #tpu.memory_space<vmem>>, vector<256x128xf32>
    %cst = arith.constant 1.000000e+00 : f32
    %4 = vector.broadcast %cst : f32 to vector<256x128xf32>
    %5 = arith.subf %3, %4 : vector<256x128xf32>
    %6 = arith.mulf %5, %5 : vector<256x128xf32>
    %c0_2 = arith.constant 0 : index
    %c0_3 = arith.constant 0 : index
    %7 = vector.load %arg4[%c0_2, %c0_3] : memref<64x128xf32, #tpu.memory_space<vmem>>, vector<64x128xf32>
    %8 = vector.shape_cast %6 : vector<256x128xf32> to vector<4x64x128xf32>
    %cst_4 = arith.constant dense<0.000000e+00> : vector<64x128xf32>
    %9 = vector.multi_reduction <add>, %8, %cst_4 [0] : vector<4x64x128xf32> to vector<64x128xf32>
    %10 = arith.addf %7, %9 : vector<64x128xf32>
    %c0_5 = arith.constant 0 : index
    %c0_6 = arith.constant 0 : index
    %11 = vector.load %arg4[%c0_5, %c0_6] : memref<64x128xf32, #tpu.memory_space<vmem>>, vector<64x128xf32>
    tpu.vector_store %arg4[%c0_5, %c0_6], %10 {strides = array<i32>} : memref<64x128xf32, #tpu.memory_space<vmem>>, vector<64x128xf32>,
    %c0_i32_7 = arith.constant 0 : i32
    %12 = arith.cmpi eq, %arg1, %c0_i32_7 : i32
    %13 = arith.extui %12 : i1 to i32
    %c0_i32_8 = arith.constant 0 : i32
    %14 = arith.cmpi ne, %13, %c0_i32_8 : i32
    scf.if %14 {
      %c0_9 = arith.constant 0 : index
      %c0_10 = arith.constant 0 : index
      %15 = vector.load %arg4[%c0_9, %c0_10] : memref<64x128xf32, #tpu.memory_space<vmem>>, vector<64x128xf32>
      %cst_11 = arith.constant dense<0.000000e+00> : vector<128xf32>
      %16 = vector.multi_reduction <add>, %15, %cst_11 [0] : vector<64x128xf32> to vector<128xf32>
      %17 = vector.shape_cast %16 : vector<128xf32> to vector<1x128xf32>
      %18 = vector.shape_cast %17 : vector<1x128xf32> to vector<1x1x128xf32>
      %c0_12 = arith.constant 0 : index
      %c0_13 = arith.constant 0 : index
      %c0_14 = arith.constant 0 : index
      %19 = vector.load %arg3[%c0_12, %c0_13, %c0_14] : memref<1x1x128xf32, #tpu.memory_space<vmem>>, vector<1x1x128xf32>
      tpu.vector_store %arg3[%c0_12, %c0_13, %c0_14], %18 {strides = array<i32>} : memref<1x1x128xf32, #tpu.memory_space<vmem>>, vector<1x1x128xf32>,
    } else {
    }
    return
  }
  func.func @transform_0(%arg0: i32, %arg1: i32) -> (i32, i32) {
    %c1_i32 = arith.constant 1 : i32
    %0 = arith.muli %arg0, %c1_i32 : i32
    %1 = arith.addi %0, %arg1 : i32
    %c0_i32 = arith.constant 0 : i32
    %2 = arith.minsi %1, %c0_i32 : i32
    %c0_i32_0 = arith.constant 0 : i32
    %c0_i32_1 = arith.constant 0 : i32
    return %2, %c0_i32_0 : i32, i32
  }
  func.func @transform_1(%arg0: i32, %arg1: i32) -> (i32, i32, i32) {
    %c0_i32 = arith.constant 0 : i32
    %c0_i32_0 = arith.constant 0 : i32
    %c0_i32_1 = arith.constant 0 : i32
    return %arg0, %c0_i32, %c0_i32_0 : i32, i32, i32
  }
}

</mosaic_0001>

<llo_original>
// kernel: tpu_custom_call.1
$region0: #{tpu_custom_call.1}
  #allocation0 [shape = 'u32[]', space=smem, size = 0x4, offset = 0x4, fixed_abs, tag = 'smem constant byte address 0x4 - core index']
  #allocation1 [shape = 'u32[72,128]{1,0:T(1,128)}', space=vmem, size = 0x9000, scoped, tag = 'internal scratch']
  #allocation2 [shape = 'f32[64,128]{1,0:T(8,128)}', space=vmem, size = 0x8000, scoped, tag = 'scratch operand']
  %s0 = inlined_call_operand.hbm [shape: f32[256,128], index: 0, kind: input, shape index: {}]
  %s1 = inlined_call_operand.hbm [shape: f32[1,1,128], index: 1, kind: output, shape index: {}]
  %s2 = sld [smem:[#allocation0]]
  $region26: #{tpu_custom_call.1} parent=0
    _
  %s4 = ssub.s32 1, %s2
  %s5 = scalar_select 0, %s4, %s2
  $region1: #{tpu_custom_call.1} parent=0
    #allocation3 [shape = 'u8[131072]{0}', space=vmem, size = 0x20000, scoped, tag = 'input window, operand 0, single buffered']
    #allocation4 [shape = 's32[1]{0}', space=sflag, size = 0x4, scoped, tag = 'scoped memory for tpu_custom_call.1']
    #allocation5 [shape = 's32[1]{0}', space=sflag, size = 0x4, scoped, tag = 'scoped memory for tpu_custom_call.1']
    #allocation6 [shape = 'u8[512]{0}', space=vmem, size = 0x400, scoped, tag = 'output window, operand 0, single buffered']
    %6 = vsyncpa [#allocation4], 0
    %7 = vsyncpa [#allocation5], 0
    // Predicated region
    $region2: #{tpu_custom_call.1} parent=1 // pred_check
      _
    $region3: #{tpu_custom_call.1} parent=1 // pred_check_branch
      %9 = sbr.rel (0) target = $region5
    $region4: #{tpu_custom_call.1} parent=1 // pred_region
      %s10 = sadd.s32 0, 0
      %p11 = scmp.lt.s32.totalorder %s10, 0
      %s12 = scalar_select %p11, %s10, 0
      %s13 = smul.u32 32, %s12
      %15 = vsyncadd [#allocation4], 0
      %s16 = smul.addr %s13, 8
      %s17 = scalar_lea.hbm %s0, %s16
      %s18 = sshll.u32 %s17, 4
      %s19 = int_to_ptr.hbm [resolvable:$true] %s18
      %s20 = sshll.u32 [#allocation3], 4
      %s21 = int_to_ptr.vmem [resolvable:$true] %s20
      %26 = dma.hbm_to_vmem [thread:$0]  %s19, 4096, %s21, [#allocation4], 128, 128, 8
    $region5: #{tpu_custom_call.1} parent=1 // pred_fallthru
      _
    // Predicated region
    $region6: #{tpu_custom_call.1} parent=1 // pred_check
      _
    $region7: #{tpu_custom_call.1} parent=1 // pred_check_branch
      %28 = sbr.rel (0) target = $region9
    $region8: #{tpu_custom_call.1} parent=1 // pred_region
      %30 = dma.done [#allocation4], 4096
    $region9: #{tpu_custom_call.1} parent=1 // pred_fallthru
      _
    %s31 = sadd.s32 0, 0
    %p32 = scmp.lt.s32.totalorder %s31, 0
    %s33 = scalar_select %p32, %s31, 0
    %s34 = smul.u32 32, %s33
    %p35 = scmp.eq.s32.totalorder 0, 0
    // Predicated region
    $region10: #{tpu_custom_call.1} parent=1 // pred_check
      %p36 = pneg %p35
    $region11: #{tpu_custom_call.1} parent=1 // pred_check_branch
      %38 = sbr.rel (%p36) target = $region13
    $region12: #{tpu_custom_call.1} parent=1 // pred_region
      %39 = vst [vmem:[#allocation2] sm:$0xff] 0.0
      %40 = vst [vmem:[#allocation2 + $0x8] sm:$0xff] 0.0
      %41 = vst [vmem:[#allocation2 + $0x10] sm:$0xff] 0.0
      %42 = vst [vmem:[#allocation2 + $0x18] sm:$0xff] 0.0
      %43 = vst [vmem:[#allocation2 + $0x20] sm:$0xff] 0.0
      %44 = vst [vmem:[#allocation2 + $0x28] sm:$0xff] 0.0
      %45 = vst [vmem:[#allocation2 + $0x30] sm:$0xff] 0.0
      %46 = vst [vmem:[#allocation2 + $0x38] sm:$0xff] 0.0
    $region13: #{tpu_custom_call.1} parent=1 // pred_fallthru
      _
    %v47 = vld [vmem:[#allocation3] sm:$0xff]
    %v48 = vld [vmem:[#allocation3 + $0x8] sm:$0xff]
    %v49 = vld [vmem:[#allocation3 + $0x10] sm:$0xff]
    %v50 = vld [vmem:[#allocation3 + $0x18] sm:$0xff]
    %v51 = vld [vmem:[#allocation3 + $0x20] sm:$0xff]
    %v52 = vld [vmem:[#allocation3 + $0x28] sm:$0xff]
    %v53 = vld [vmem:[#allocation3 + $0x30] sm:$0xff]
    %v54 = vld [vmem:[#allocation3 + $0x38] sm:$0xff]
    %v55 = vld [vmem:[#allocation3 + $0x40] sm:$0xff]
    %v56 = vld [vmem:[#allocation3 + $0x48] sm:$0xff]
    %v57 = vld [vmem:[#allocation3 + $0x50] sm:$0xff]
    %v58 = vld [vmem:[#allocation3 + $0x58] sm:$0xff]
    %v59 = vld [vmem:[#allocation3 + $0x60] sm:$0xff]
    %v60 = vld [vmem:[#allocation3 + $0x68] sm:$0xff]
    %v61 = vld [vmem:[#allocation3 + $0x70] sm:$0xff]
    %v62 = vld [vmem:[#allocation3 + $0x78] sm:$0xff]
    %v63 = vld [vmem:[#allocation3 + $0x80] sm:$0xff]
    %v64 = vld [vmem:[#allocation3 + $0x88] sm:$0xff]
    %v65 = vld [vmem:[#allocation3 + $0x90] sm:$0xff]
    %v66 = vld [vmem:[#allocation3 + $0x98] sm:$0xff]
    %v67 = vld [vmem:[#allocation3 + $0xa0] sm:$0xff]
    %v68 = vld [vmem:[#allocation3 + $0xa8] sm:$0xff]
    %v69 = vld [vmem:[#allocation3 + $0xb0] sm:$0xff]
    %v70 = vld [vmem:[#allocation3 + $0xb8] sm:$0xff]
    %v71 = vld [vmem:[#allocation3 + $0xc0] sm:$0xff]
    %v72 = vld [vmem:[#allocation3 + $0xc8] sm:$0xff]
    %v73 = vld [vmem:[#allocation3 + $0xd0] sm:$0xff]
    %v74 = vld [vmem:[#allocation3 + $0xd8] sm:$0xff]
    %v75 = vld [vmem:[#allocation3 + $0xe0] sm:$0xff]
    %v76 = vld [vmem:[#allocation3 + $0xe8] sm:$0xff]
    %v77 = vld [vmem:[#allocation3 + $0xf0] sm:$0xff]
    %v78 = vld [vmem:[#allocation3 + $0xf8] sm:$0xff]
    %v79 = vsub.f32 %v47, 1.0
    %v80 = vsub.f32 %v48, 1.0
    %v81 = vsub.f32 %v49, 1.0
    %v82 = vsub.f32 %v50, 1.0
    %v83 = vsub.f32 %v51, 1.0
    %v84 = vsub.f32 %v52, 1.0
    %v85 = vsub.f32 %v53, 1.0
    %v86 = vsub.f32 %v54, 1.0
    %v87 = vsub.f32 %v55, 1.0
    %v88 = vsub.f32 %v56, 1.0
    %v89 = vsub.f32 %v57, 1.0
    %v90 = vsub.f32 %v58, 1.0
    %v91 = vsub.f32 %v59, 1.0
    %v92 = vsub.f32 %v60, 1.0
    %v93 = vsub.f32 %v61, 1.0
    %v94 = vsub.f32 %v62, 1.0
    %v95 = vsub.f32 %v63, 1.0
    %v96 = vsub.f32 %v64, 1.0
    %v97 = vsub.f32 %v65, 1.0
    %v98 = vsub.f32 %v66, 1.0
    %v99 = vsub.f32 %v67, 1.0
    %v100 = vsub.f32 %v68, 1.0
    %v101 = vsub.f32 %v69, 1.0
    %v102 = vsub.f32 %v70, 1.0
    %v103 = vsub.f32 %v71, 1.0
    %v104 = vsub.f32 %v72, 1.0
    %v105 = vsub.f32 %v73, 1.0
    %v106 = vsub.f32 %v74, 1.0
    %v107 = vsub.f32 %v75, 1.0
    %v108 = vsub.f32 %v76, 1.0
    %v109 = vsub.f32 %v77, 1.0
    %v110 = vsub.f32 %v78, 1.0
    %v111 = vmul.f32 %v79, %v79
    %v112 = vmul.f32 %v80, %v80
    %v113 = vmul.f32 %v81, %v81
    %v114 = vmul.f32 %v82, %v82
    %v115 = vmul.f32 %v83, %v83
    %v116 = vmul.f32 %v84, %v84
    %v117 = vmul.f32 %v85, %v85
    %v118 = vmul.f32 %v86, %v86
    %v119 = vmul.f32 %v87, %v87
    %v120 = vmul.f32 %v88, %v88
    %v121 = vmul.f32 %v89, %v89
    %v122 = vmul.f32 %v90, %v90
    %v123 = vmul.f32 %v91, %v91
    %v124 = vmul.f32 %v92, %v92
    %v125 = vmul.f32 %v93, %v93
    %v126 = vmul.f32 %v94, %v94
    %v127 = vmul.f32 %v95, %v95
    %v128 = vmul.f32 %v96, %v96
    %v129 = vmul.f32 %v97, %v97
    %v130 = vmul.f32 %v98, %v98
    %v131 = vmul.f32 %v99, %v99
    %v132 = vmul.f32 %v100, %v100
    %v133 = vmul.f32 %v101, %v101
    %v134 = vmul.f32 %v102, %v102
    %v135 = vmul.f32 %v103, %v103
    %v136 = vmul.f32 %v104, %v104
    %v137 = vmul.f32 %v105, %v105
    %v138 = vmul.f32 %v106, %v106
    %v139 = vmul.f32 %v107, %v107
    %v140 = vmul.f32 %v108, %v108
    %v141 = vmul.f32 %v109, %v109
    %v142 = vmul.f32 %v110, %v110
    %v143 = vld [vmem:[#allocation2] sm:$0xff]
    %v144 = vld [vmem:[#allocation2 + $0x8] sm:$0xff]
    %v145 = vld [vmem:[#allocation2 + $0x10] sm:$0xff]
    %v146 = vld [vmem:[#allocation2 + $0x18] sm:$0xff]
    %v147 = vld [vmem:[#allocation2 + $0x20] sm:$0xff]
    %v148 = vld [vmem:[#allocation2 + $0x28] sm:$0xff]
    %v149 = vld [vmem:[#allocation2 + $0x30] sm:$0xff]
    %v150 = vld [vmem:[#allocation2 + $0x38] sm:$0xff]
    %v151 = vadd.f32 %v111, %v119
    %v152 = vadd.f32 %v151, %v127
    %v153 = vadd.f32 %v152, %v135
    %v154 = vadd.f32 %v112, %v120
    %v155 = vadd.f32 %v154, %v128
    %v156 = vadd.f32 %v155, %v136
    %v157 = vadd.f32 %v113, %v121
    %v158 = vadd.f32 %v157, %v129
    %v159 = vadd.f32 %v158, %v137
    %v160 = vadd.f32 %v114, %v122
    %v161 = vadd.f32 %v160, %v130
    %v162 = vadd.f32 %v161, %v138
    %v163 = vadd.f32 %v115, %v123
    %v164 = vadd.f32 %v163, %v131
    %v165 = vadd.f32 %v164, %v139
    %v166 = vadd.f32 %v116, %v124
    %v167 = vadd.f32 %v166, %v132
    %v168 = vadd.f32 %v167, %v140
    %v169 = vadd.f32 %v117, %v125
    %v170 = vadd.f32 %v169, %v133
    %v171 = vadd.f32 %v170, %v141
    %v172 = vadd.f32 %v118, %v126
    %v173 = vadd.f32 %v172, %v134
    %v174 = vadd.f32 %v173, %v142
    %v175 = vadd.f32 %v143, %v153
    %v176 = vadd.f32 %v144, %v156
    %v177 = vadd.f32 %v145, %v159
    %v178 = vadd.f32 %v146, %v162
    %v179 = vadd.f32 %v147, %v165
    %v180 = vadd.f32 %v148, %v168
    %v181 = vadd.f32 %v149, %v171
    %v182 = vadd.f32 %v150, %v174
    %183 = vst [vmem:[#allocation2] sm:$0xff] %v175
    %184 = vst [vmem:[#allocation2 + $0x8] sm:$0xff] %v176
    %185 = vst [vmem:[#allocation2 + $0x10] sm:$0xff] %v177
    %186 = vst [vmem:[#allocation2 + $0x18] sm:$0xff] %v178
    %187 = vst [vmem:[#allocation2 + $0x20] sm:$0xff] %v179
    %188 = vst [vmem:[#allocation2 + $0x28] sm:$0xff] %v180
    %189 = vst [vmem:[#allocation2 + $0x30] sm:$0xff] %v181
    %190 = vst [vmem:[#allocation2 + $0x38] sm:$0xff] %v182
    // Predicated region
    $region14: #{tpu_custom_call.1} parent=1 // pred_check
      %p191 = pneg %p35
    $region15: #{tpu_custom_call.1} parent=1 // pred_check_branch
      %193 = sbr.rel (%p191) target = $region17
    $region16: #{tpu_custom_call.1} parent=1 // pred_region
      %v194 = vld [vmem:[#allocation2] sm:$0xff]
      %v195 = vld [vmem:[#allocation2 + $0x8] sm:$0xff]
      %v196 = vld [vmem:[#allocation2 + $0x10] sm:$0xff]
      %v197 = vld [vmem:[#allocation2 + $0x18] sm:$0xff]
      %v198 = vld [vmem:[#allocation2 + $0x20] sm:$0xff]
      %v199 = vld [vmem:[#allocation2 + $0x28] sm:$0xff]
      %v200 = vld [vmem:[#allocation2 + $0x30] sm:$0xff]
      %v201 = vld [vmem:[#allocation2 + $0x38] sm:$0xff]
      %v202 = vadd.f32 %v194, %v195
      %v203 = vadd.f32 %v202, %v196
      %v204 = vadd.f32 %v203, %v197
      %v205 = vadd.f32 %v204, %v198
      %v206 = vadd.f32 %v205, %v199
      %v207 = vadd.f32 %v206, %v200
      %v208 = vadd.f32 %v207, %v201
      %v209 = vrot.slane %v208, 4
      %v210 = vadd.f32 %v208, %v209
      %v211 = vrot.slane %v210, 2
      %v212 = vadd.f32 %v210, %v211
      %v213 = vrot.slane %v212, 1
      %v214 = vadd.f32 %v212, %v213
      %215 = vst [vmem:[#allocation6] sm:$0x1] %v214
    $region17: #{tpu_custom_call.1} parent=1 // pred_fallthru
      _
    // Predicated region
    $region18: #{tpu_custom_call.1} parent=1 // pred_check
      _
    $region19: #{tpu_custom_call.1} parent=1 // pred_check_branch
      %217 = sbr.rel (0) target = $region21
    $region20: #{tpu_custom_call.1} parent=1 // pred_region
      %219 = vsyncadd [#allocation5], 0
      %s221 = sshll.u32 [#allocation6], 4
      %s222 = int_to_ptr.vmem [resolvable:$true] %s221
      %s223 = sshll.u32 %s1, 4
      %s224 = int_to_ptr.hbm [resolvable:$true] %s223
      %226 = dma.vmem_to_hbm [thread:$0]  %s222, 16, %s224, [#allocation5]
    $region21: #{tpu_custom_call.1} parent=1 // pred_fallthru
      _
    // Predicated region
    $region22: #{tpu_custom_call.1} parent=1 // pred_check
      _
    $region23: #{tpu_custom_call.1} parent=1 // pred_check_branch
      %228 = sbr.rel (0) target = $region25
    $region24: #{tpu_custom_call.1} parent=1 // pred_region
      %230 = dma.done [#allocation5], 16
    $region25: #{tpu_custom_call.1} parent=1 // pred_fallthru
      _
    %231 = vsyncpa [#allocation4], 1
    %232 = vsyncpa [#allocation5], 1

</llo_original>
